<compile_context>
chip_gen: v7x
topology: tpu7x:2x2x1
jax: 0.10.0
libtpu: 0.0.40
codegen_flags: <defaults>
</compile_context>

<pallas_src>
import jax
import jax.numpy as jnp
import numpy as np
from jax.experimental import pallas as pl
from jax.experimental.pallas import tpu as pltpu

LANE = 128
SUBLANE = 8


def _round_up(v, m):
    return -(-v // m) * m


def adaptive_avg_pool1d_matrix(n_in, n_out):
    """(n_in, n_out) matrix reproducing torch.nn.AdaptiveAvgPool1d exactly."""
    m = np.zeros((n_in, n_out), dtype=np.float32)
    for i in range(n_out):
        start = (i * n_in) // n_out
        end = -((-(i + 1) * n_in) // n_out)   # ceil((i+1)*n_in / n_out)
        m[start:end, i] = 1.0 / (end - start)
    return m


def prepare_cnn_params(conv_w, conv_b, lin_w, lin_b,
                       length_his, emb_dim, window_size, pool_size):
    """One-time host-side parameter re-layout (call once, reuse every step).

    Returns lane-dense (128-padded) operands:
      wc: (L*E, NCp) bf16  banded conv weight
      bc: (1,  NCp)  f32   conv bias (tiled per position)
      wm: (NCp, Cp)  bf16  fused adaptive-avg-pool + Linear weight
      bm: (1,  Cp)   f32   linear bias
    """
    L, E, W, P = length_his, emb_dim, window_size, pool_size
    conv_w = np.asarray(conv_w, np.float32)
    conv_b = np.asarray(conv_b, np.float32)
    lin_w = np.asarray(lin_w, np.float32)
    lin_b = np.asarray(lin_b, np.float32)
    C = conv_w.shape[0]
    N = L - W + 1                                   # new_seq_len
    NCp = _round_up(N * C, LANE)
    Cp = _round_up(C, LANE)

    # Banded conv matrix: wc[l*E+e, n*C+c] = conv_w[c, l-n, e] for n <= l < n+W.
    blk = conv_w.reshape(C, W, E).transpose(1, 2, 0).reshape(W * E, C)
    wc = np.zeros((L * E, NCp), np.float32)
    rows = np.arange(N)[:, None] * E + np.arange(W * E)[None, :]   # (N, W*E)
    cols = np.arange(N)[:, None] * C + np.arange(C)[None, :]       # (N, C)
    wc[rows[:, :, None], cols[:, None, :]] = blk[None, :, :]       # single scatter

    bc = np.zeros((1, NCp), np.float32)
    bc[0, :N * C] = np.tile(conv_b, N)

    # Fused pool + Linear: wm[n*C+c, j] = sum_p pool[n,p] * lin_w[j, c*P+p].
    pm = adaptive_avg_pool1d_matrix(N, P)                          # (N, P)
    lw3 = lin_w.reshape(C, C, P)                                   # (j, c, p)
    wm = np.zeros((NCp, Cp), np.float32)
    wm[:N * C, :C] = np.einsum('np,jcp->ncj', pm, lw3).reshape(N * C, C)
    bm = np.zeros((1, Cp), np.float32)
    bm[0, :C] = lin_b

    return dict(
        wc=jnp.asarray(wc, jnp.bfloat16),
        bc=jnp.asarray(bc, jnp.float32),
        wm=jnp.asarray(wm, jnp.bfloat16),
        bm=jnp.asarray(bm, jnp.float32),
        out_channels=int(C),
    )


def _cnn_kernel(x_ref, wc_ref, bc_ref, wm_ref, bm_ref, o_ref):
    # conv as one banded matmul: (T, L*E) @ (L*E, NCp) -> (T, NCp), f32 acc.
    h = jnp.dot(x_ref[...], wc_ref[...], preferred_element_type=jnp.float32)
    h = h + bc_ref[...]
    h = jnp.maximum(h, 0.01 * h)                        # LeakyReLU (slope 0.01)
    # fused adaptive-avg-pool + Linear: (T, NCp) @ (NCp, Cp) -> (T, Cp).
    out = jnp.dot(h.astype(wm_ref.dtype), wm_ref[...],
                  preferred_element_type=jnp.float32)
    out = out + bm_ref[...]
    o_ref[...] = jnp.maximum(out, 0.01 * out)           # final LeakyReLU


def cnn_apply_pallas(x, params, batch_tile=4096):
    """Forward pass. x: (B, L, E) float; returns (B, C) float32."""
    wc, bc, wm, bm = params['wc'], params['bc'], params['wm'], params['bm']
    C = params['out_channels']
    B, L, E = x.shape
    K1 = L * E
    NCp = wc.shape[1]
    Cp = wm.shape[1]

    xf = x.reshape(B, K1).astype(jnp.bfloat16)          # dominant HBM stream in bf16

    # ---- batch tiling: sublane-aligned, VMEM-capped, >=2 parallel steps when
    # possible (v7x megacore uses the parallel grid axis to shard across TCs).
    bytes_per_row = 2 * (K1 * 2 + Cp * 4)               # double-buffered in + out
    tile_cap = max(SUBLANE,
                   ((24 << 20) // max(bytes_per_row, 1)) // SUBLANE * SUBLANE)
    batch_tile = max(SUBLANE, min(batch_tile, tile_cap) // SUBLANE * SUBLANE)

    Bp = _round_up(B, SUBLANE)
    tile = min(batch_tile, Bp)
    if tile == Bp and Bp >= 2 * SUBLANE:
        tile = _round_up(Bp // 2, SUBLANE)              # keep >= 2 grid steps
    Bp = _round_up(Bp, tile)
    if Bp != B:
        xf = jnp.pad(xf, ((0, Bp - B), (0, 0)))
    grid = (Bp // tile,)

    weight_bytes = wc.size * 2 + wm.size * 2 + (bc.size + bm.size) * 4
    vmem_needed = tile * bytes_per_row + 2 * weight_bytes
    vmem_limit = int(min(max(vmem_needed + (4 << 20), 16 << 20), 64 << 20))

    y = pl.pallas_call(
        _cnn_kernel,
        out_shape=jax.ShapeDtypeStruct((Bp, Cp), jnp.float32),
        grid=grid,
        in_specs=[
            pl.BlockSpec((tile, K1), lambda b: (b, 0)),   # x batch tile (bf16)
            pl.BlockSpec((K1, NCp), lambda b: (0, 0)),    # banded conv weight
            pl.BlockSpec((1, NCp), lambda b: (0, 0)),     # conv bias
            pl.BlockSpec((NCp, Cp), lambda b: (0, 0)),    # fused pool+linear
            pl.BlockSpec((1, Cp), lambda b: (0, 0)),      # linear bias
        ],
        out_specs=pl.BlockSpec((tile, Cp), lambda b: (b, 0)),
        compiler_params=pltpu.CompilerParams(
            dimension_semantics=("parallel",),
            vmem_limit_bytes=vmem_limit),
    )(xf, wc, bc, wm, bm)
    return y[:B, :C]


def cnn_forward_pallas(x, conv_w, conv_b, lin_w, lin_b, window_size, pool_size,
                       batch_tile=4096):
    """Convenience wrapper: re-layout + apply (prefer caching prepare_cnn_params)."""
    B, L, E = x.shape
    params = prepare_cnn_params(conv_w, conv_b, lin_w, lin_b,
                                L, E, window_size, pool_size)
    return cnn_apply_pallas(x, params, batch_tile=batch_tile)


def cnn_forward_ref(x, conv_w, conv_b, lin_w, lin_b, window_size, pool_size):
    """Pure-JAX f32 reference matching the PyTorch forward exactly."""
    B, L, E = x.shape
    C = conv_w.shape[0]
    W, P = window_size, pool_size
    N = L - W + 1
    cols = jnp.stack([x[:, w:w + N, :] for w in range(W)], axis=2)  # (B,N,W,E)
    conv = jnp.einsum('bnwe,cwe->bcn', cols, conv_w.reshape(C, W, E))
    conv = conv + conv_b[None, :, None]
    conv = jnp.where(conv >= 0, conv, 0.01 * conv)
    pm = jnp.asarray(adaptive_avg_pool1d_matrix(N, P))              # (N, P)
    pooled = jnp.einsum('bcn,np->bcp', conv, pm)                    # (B, C, P)
    flat = pooled.reshape(B, C * P)
    out = flat @ lin_w.T + lin_b
    return jnp.where(out >= 0, out, 0.01 * out)


if __name__ == "__main__":
    # config: length_his=16, emb_dim=8, window_size=4, pool_size=4, out_channels=8
    B, L, E = 2, 16, 8
    W, C, P = 4, 8, 4

    key = jax.random.PRNGKey(0)
    k1, k2, k3, k4, k5 = jax.random.split(key, 5)
    x = jax.random.normal(k1, (B, L, E), jnp.float32)
    conv_w = jax.random.normal(k2, (C, 1, W, E), jnp.float32) * 0.1
    conv_b = jax.random.normal(k3, (C,), jnp.float32) * 0.1
    lin_w = jax.random.normal(k4, (C, C * P), jnp.float32) * 0.1
    lin_b = jax.random.normal(k5, (C,), jnp.float32) * 0.1

    params = prepare_cnn_params(conv_w, conv_b, lin_w, lin_b, L, E, W, P)
    y = cnn_apply_pallas(x, params)
    y = jax.block_until_ready(y)

    y_ref = cnn_forward_ref(x, conv_w, conv_b, lin_w, lin_b, W, P)
    # bf16 input/weight streams => ~1e-2 relative drift vs the f32 reference.
    np.testing.assert_allclose(np.asarray(y), np.asarray(y_ref),
                               rtol=2e-2, atol=2e-2)
    print("KERNEL_OK")
</pallas_src>

<mosaic_0001>
module attributes {stable_mosaic.version = 11 : i64} {
  func.func @_cnn_kernel(%arg0: i32, %arg1: memref<8x128xbf16, #tpu.memory_space<vmem>>, %arg2: memref<128x128xbf16, #tpu.memory_space<vmem>>, %arg3: memref<1x128xf32, #tpu.memory_space<vmem>>, %arg4: memref<128x128xbf16, #tpu.memory_space<vmem>>, %arg5: memref<1x128xf32, #tpu.memory_space<vmem>>, %arg6: memref<8x128xf32, #tpu.memory_space<vmem>>) attributes {dimension_semantics = [#tpu.dimension_semantics<parallel>], iteration_bounds = array<i64: 1>, scalar_prefetch = 0 : i64, scratch_operands = 0 : i64, tpu.core_type = #tpu.core_type<tc>, window_params = [{transform_indices = @transform_0, window_bounds = array<i64: 8, 128>}, {pipeline_mode = #tpu.pipeline_mode<synchronous>, transform_indices = @transform_1, window_bounds = array<i64: 128, 128>}, {pipeline_mode = #tpu.pipeline_mode<synchronous>, transform_indices = @transform_2, window_bounds = array<i64: 1, 128>}, {pipeline_mode = #tpu.pipeline_mode<synchronous>, transform_indices = @transform_3, window_bounds = array<i64: 128, 128>}, {pipeline_mode = #tpu.pipeline_mode<synchronous>, transform_indices = @transform_4, window_bounds = array<i64: 1, 128>}, {transform_indices = @transform_5, window_bounds = array<i64: 8, 128>}]} {
    %c0 = arith.constant 0 : index
    %c0_0 = arith.constant 0 : index
    %0 = vector.load %arg1[%c0, %c0_0] : memref<8x128xbf16, #tpu.memory_space<vmem>>, vector<8x128xbf16>
    %c0_1 = arith.constant 0 : index
    %c0_2 = arith.constant 0 : index
    %1 = vector.load %arg2[%c0_1, %c0_2] : memref<128x128xbf16, #tpu.memory_space<vmem>>, vector<128x128xbf16>
    %cst = arith.constant dense<0.000000e+00> : vector<8x128xf32>
    %2 = tpu.matmul %0, %1, %cst {dimension_numbers = #tpu.dot_dimension_numbers<[1], [0], [0], [1], [0, 0, 1, 1], [], []>} : vector<8x128xbf16>, vector<128x128xbf16>, vector<8x128xf32> -> vector<8x128xf32>
    %c0_3 = arith.constant 0 : index
    %c0_4 = arith.constant 0 : index
    %3 = vector.load %arg3[%c0_3, %c0_4] : memref<1x128xf32, #tpu.memory_space<vmem>>, vector<1x128xf32>
    %4 = vector.broadcast %3 : vector<1x128xf32> to vector<8x128xf32>
    %5 = arith.addf %2, %4 : vector<8x128xf32>
    %cst_5 = arith.constant 0.00999999977 : f32
    %6 = vector.broadcast %cst_5 : f32 to vector<8x128xf32>
    %7 = arith.mulf %6, %5 : vector<8x128xf32>
    %8 = arith.maximumf %5, %7 : vector<8x128xf32>
    %9 = arith.truncf %8 : vector<8x128xf32> to vector<8x128xbf16>
    %c0_6 = arith.constant 0 : index
    %c0_7 = arith.constant 0 : index
    %10 = vector.load %arg4[%c0_6, %c0_7] : memref<128x128xbf16, #tpu.memory_space<vmem>>, vector<128x128xbf16>
    %cst_8 = arith.constant dense<0.000000e+00> : vector<8x128xf32>
    %11 = tpu.matmul %9, %10, %cst_8 {dimension_numbers = #tpu.dot_dimension_numbers<[1], [0], [0], [1], [0, 0, 1, 1], [], []>} : vector<8x128xbf16>, vector<128x128xbf16>, vector<8x128xf32> -> vector<8x128xf32>
    %c0_9 = arith.constant 0 : index
    %c0_10 = arith.constant 0 : index
    %12 = vector.load %arg5[%c0_9, %c0_10] : memref<1x128xf32, #tpu.memory_space<vmem>>, vector<1x128xf32>
    %13 = vector.broadcast %12 : vector<1x128xf32> to vector<8x128xf32>
    %14 = arith.addf %11, %13 : vector<8x128xf32>
    %cst_11 = arith.constant 0.00999999977 : f32
    %15 = vector.broadcast %cst_11 : f32 to vector<8x128xf32>
    %16 = arith.mulf %15, %14 : vector<8x128xf32>
    %17 = arith.maximumf %14, %16 : vector<8x128xf32>
    %c0_12 = arith.constant 0 : index
    %c0_13 = arith.constant 0 : index
    %18 = vector.load %arg6[%c0_12, %c0_13] : memref<8x128xf32, #tpu.memory_space<vmem>>, vector<8x128xf32>
    tpu.vector_store %arg6[%c0_12, %c0_13], %17 {strides = array<i32>} : memref<8x128xf32, #tpu.memory_space<vmem>>, vector<8x128xf32>,
    return
  }
  func.func @transform_0(%arg0: i32) -> (i32, i32) {
    %c0_i32 = arith.constant 0 : i32
    %c0_i32_0 = arith.constant 0 : i32
    return %arg0, %c0_i32 : i32, i32
  }
  func.func @transform_1(%arg0: i32) -> (i32, i32) {
    %c0_i32 = arith.constant 0 : i32
    %c0_i32_0 = arith.constant 0 : i32
    %c0_i32_1 = arith.constant 0 : i32
    return %c0_i32, %c0_i32_0 : i32, i32
  }
  func.func @transform_2(%arg0: i32) -> (i32, i32) {
    %c0_i32 = arith.constant 0 : i32
    %c0_i32_0 = arith.constant 0 : i32
    %c0_i32_1 = arith.constant 0 : i32
    return %c0_i32, %c0_i32_0 : i32, i32
  }
  func.func @transform_3(%arg0: i32) -> (i32, i32) {
    %c0_i32 = arith.constant 0 : i32
    %c0_i32_0 = arith.constant 0 : i32
    %c0_i32_1 = arith.constant 0 : i32
    return %c0_i32, %c0_i32_0 : i32, i32
  }
  func.func @transform_4(%arg0: i32) -> (i32, i32) {
    %c0_i32 = arith.constant 0 : i32
    %c0_i32_0 = arith.constant 0 : i32
    %c0_i32_1 = arith.constant 0 : i32
    return %c0_i32, %c0_i32_0 : i32, i32
  }
  func.func @transform_5(%arg0: i32) -> (i32, i32) {
    %c0_i32 = arith.constant 0 : i32
    %c0_i32_0 = arith.constant 0 : i32
    return %arg0, %c0_i32 : i32, i32
  }
}

</mosaic_0001>

<llo_original>
// kernel: tpu_custom_call.1
$region0: #{tpu_custom_call.1}
  #allocation0 [shape = 'u32[]', space=smem, size = 0x4, offset = 0x4, fixed_abs, tag = 'smem constant byte address 0x4 - core index']
  #allocation1 [shape = 'u32[144,128]{1,0:T(1,128)}', space=vmem, size = 0x12000, scoped, tag = 'internal scratch']
  %s0 = inlined_call_operand.hbm [shape: bf16[8,128], index: 0, kind: input, shape index: {}]
  %s1 = inlined_call_operand.hbm [shape: bf16[128,128], index: 1, kind: input, shape index: {}]
  %s2 = inlined_call_operand.vmem [shape: f32[1,128], index: 2, kind: input, shape index: {}]
  %s3 = inlined_call_operand.hbm [shape: bf16[128,128], index: 3, kind: input, shape index: {}]
  %s4 = inlined_call_operand.vmem [shape: f32[1,128], index: 4, kind: input, shape index: {}]
  %s5 = inlined_call_operand.hbm [shape: f32[8,128], index: 5, kind: output, shape index: {}]
  %s6 = sld [smem:[#allocation0]]
  $region42: #{tpu_custom_call.1} parent=0
    _
  %s8 = ssub.s32 1, %s6
  %s9 = scalar_select 0, %s8, %s6
  $region1: #{tpu_custom_call.1} parent=0
    #allocation2 [shape = 'u8[2048]{0}', space=vmem, size = 0x800, scoped, tag = 'input window, operand 0, single buffered']
    #allocation3 [shape = 's32[1]{0}', space=sflag, size = 0x4, scoped, tag = 'scoped memory for tpu_custom_call.1']
    #allocation4 [shape = 's32[1]{0}', space=sflag, size = 0x4, scoped, tag = 'scoped memory for tpu_custom_call.1']
    #allocation5 [shape = 'u8[32768]{0}', space=vmem, size = 0x8000, scoped, tag = 'input window, operand 1, single buffered']
    #allocation6 [shape = 's32[1]{0}', space=sflag, size = 0x4, scoped, tag = 'scoped memory for tpu_custom_call.1']
    #allocation7 [shape = 'u8[32768]{0}', space=vmem, size = 0x8000, scoped, tag = 'input window, operand 3, single buffered']
    #allocation8 [shape = 'u8[4096]{0}', space=vmem, size = 0x1000, scoped, tag = 'output window, operand 0, single buffered']
    %10 = vsyncpa [#allocation3], 0
    %11 = vsyncpa [#allocation6], 0
    %12 = vsyncpa [#allocation4], 0
    // Predicated region
    $region2: #{tpu_custom_call.1} parent=1 // pred_check
      _
    $region3: #{tpu_custom_call.1} parent=1 // pred_check_branch
      %14 = sbr.rel (0) target = $region5
    $region4: #{tpu_custom_call.1} parent=1 // pred_region
      %s16 = ssub.s32 64, 64
      %17 = vsyncadd [#allocation3], %s16
      %s19 = sshll.u32 [#allocation2], 4
      %s20 = int_to_ptr.vmem [resolvable:$true] %s19
      %22 = dma.hbm_to_vmem [thread:$0]  %s0, 64, %s20, [#allocation3]
    $region5: #{tpu_custom_call.1} parent=1 // pred_fallthru
      _
    // Predicated region
    $region6: #{tpu_custom_call.1} parent=1 // pred_check
      _
    $region7: #{tpu_custom_call.1} parent=1 // pred_check_branch
      %24 = sbr.rel (0) target = $region9
    $region8: #{tpu_custom_call.1} parent=1 // pred_region
      %s26 = ssub.s32 1024, 1024
      %27 = vsyncadd [#allocation6], %s26
      %s28 = sshll.u32 [#allocation5], 4
      %s29 = int_to_ptr.vmem [resolvable:$true] %s28
      %34 = dma.hbm_to_vmem [thread:$0]  %s1, 1024, %s29, [#allocation6], 64, 64, 4
    $region9: #{tpu_custom_call.1} parent=1 // pred_fallthru
      _
    // Predicated region
    $region10: #{tpu_custom_call.1} parent=1 // pred_check
      _
    $region11: #{tpu_custom_call.1} parent=1 // pred_check_branch
      %36 = sbr.rel (0) target = $region13
    $region12: #{tpu_custom_call.1} parent=1 // pred_region
      _
    $region13: #{tpu_custom_call.1} parent=1 // pred_fallthru
      _
    // Predicated region
    $region14: #{tpu_custom_call.1} parent=1 // pred_check
      _
    $region15: #{tpu_custom_call.1} parent=1 // pred_check_branch
      %38 = sbr.rel (0) target = $region17
    $region16: #{tpu_custom_call.1} parent=1 // pred_region
      %s40 = ssub.s32 1024, 1024
      %41 = vsyncadd [#allocation6], %s40
      %s42 = sshll.u32 [#allocation7], 4
      %s43 = int_to_ptr.vmem [resolvable:$true] %s42
      %48 = dma.hbm_to_vmem [thread:$0]  %s3, 1024, %s43, [#allocation6], 64, 64, 4
    $region17: #{tpu_custom_call.1} parent=1 // pred_fallthru
      _
    // Predicated region
    $region18: #{tpu_custom_call.1} parent=1 // pred_check
      _
    $region19: #{tpu_custom_call.1} parent=1 // pred_check_branch
      %50 = sbr.rel (0) target = $region21
    $region20: #{tpu_custom_call.1} parent=1 // pred_region
      _
    $region21: #{tpu_custom_call.1} parent=1 // pred_fallthru
      _
    // Predicated region
    $region22: #{tpu_custom_call.1} parent=1 // pred_check
      _
    $region23: #{tpu_custom_call.1} parent=1 // pred_check_branch
      %52 = sbr.rel (0) target = $region25
    $region24: #{tpu_custom_call.1} parent=1 // pred_region
      %53 = dma.done [#allocation3], 64
    $region25: #{tpu_custom_call.1} parent=1 // pred_fallthru
      _
    // Predicated region
    $region26: #{tpu_custom_call.1} parent=1 // pred_check
      _
    $region27: #{tpu_custom_call.1} parent=1 // pred_check_branch
      %55 = sbr.rel (0) target = $region29
    $region28: #{tpu_custom_call.1} parent=1 // pred_region
      %56 = dma.done [#allocation6], 1024
    $region29: #{tpu_custom_call.1} parent=1 // pred_fallthru
      _
    // Predicated region
    $region30: #{tpu_custom_call.1} parent=1 // pred_check
      _
    $region31: #{tpu_custom_call.1} parent=1 // pred_check_branch
      %58 = sbr.rel (0) target = $region33
    $region32: #{tpu_custom_call.1} parent=1 // pred_region
      %59 = dma.done [#allocation6], 1024
    $region33: #{tpu_custom_call.1} parent=1 // pred_fallthru
      _
    %v61 = vld [vmem:[#allocation2] sm:$0xf]
    %v62 = vld [vmem:[#allocation5] sm:$0xf]
    %v63 = vld [vmem:[#allocation5 + $0x4] sm:$0xf]
    %v64 = vld [vmem:[#allocation5 + $0x8] sm:$0xf]
    %v65 = vld [vmem:[#allocation5 + $0xc] sm:$0xf]
    %v66 = vld [vmem:[#allocation5 + $0x10] sm:$0xf]
    %v67 = vld [vmem:[#allocation5 + $0x14] sm:$0xf]
    %v68 = vld [vmem:[#allocation5 + $0x18] sm:$0xf]
    %v69 = vld [vmem:[#allocation5 + $0x1c] sm:$0xf]
    %v70 = vld [vmem:[#allocation5 + $0x20] sm:$0xf]
    %v71 = vld [vmem:[#allocation5 + $0x24] sm:$0xf]
    %v72 = vld [vmem:[#allocation5 + $0x28] sm:$0xf]
    %v73 = vld [vmem:[#allocation5 + $0x2c] sm:$0xf]
    %v74 = vld [vmem:[#allocation5 + $0x30] sm:$0xf]
    %v75 = vld [vmem:[#allocation5 + $0x34] sm:$0xf]
    %v76 = vld [vmem:[#allocation5 + $0x38] sm:$0xf]
    %v77 = vld [vmem:[#allocation5 + $0x3c] sm:$0xf]
    %v78 = vld [vmem:[%s2] sm:$0x1]
    %v80 = vlaneseq
    %v81 = vshrl.u32 %v80, 7
    %v82 = vsub.s32 0, %v81
    %v83 = vrot.slane %v78, %v82
    %v101 = vunpack.c.l.b16 %v62
    %v102 = vunpack.c.l.b16 %v63
    %v103 = vunpack.c.l.b16 %v64
    %v104 = vunpack.c.l.b16 %v65
    %v105 = vunpack.c.l.b16 %v66
    %v106 = vunpack.c.l.b16 %v67
    %v107 = vunpack.c.l.b16 %v68
    %v108 = vunpack.c.l.b16 %v69
    %v109 = vunpack.c.l.b16 %v70
    %v110 = vunpack.c.l.b16 %v71
    %v111 = vunpack.c.l.b16 %v72
    %v112 = vunpack.c.l.b16 %v73
    %v113 = vunpack.c.l.b16 %v74
    %v114 = vunpack.c.l.b16 %v75
    %v115 = vunpack.c.l.b16 %v76
    %v116 = vunpack.c.l.b16 %v77
    %v117 = vpack.c.b16 %v102, %v101
    %v118 = vpack.c.b16 %v104, %v103
    %v119 = vpack.c.b16 %v106, %v105
    %v120 = vpack.c.b16 %v108, %v107
    %v121 = vpack.c.b16 %v110, %v109
    %v122 = vpack.c.b16 %v112, %v111
    %v123 = vpack.c.b16 %v114, %v113
    %v124 = vpack.c.b16 %v116, %v115
    %133 = vmatprep.subr.bf16.mxu0 0
    %134 = vmatpush1.bf16.msra.mxu0 %v117
    %135 = vmatprep.subr.bf16.mxu0 0
    %136 = vmatpush1.bf16.msra.mxu0 %v118
    %137 = vmatprep.subr.bf16.mxu0 0
    %138 = vmatpush1.bf16.msra.mxu0 %v119
    %139 = vmatprep.subr.bf16.mxu0 0
    %140 = vmatpush1.bf16.msra.mxu0 %v120
    %141 = vmatprep.subr.bf16.mxu0 0
    %142 = vmatpush1.bf16.msra.mxu0 %v121
    %143 = vmatprep.subr.bf16.mxu0 0
    %144 = vmatpush1.bf16.msra.mxu0 %v122
    %145 = vmatprep.subr.bf16.mxu0 0
    %146 = vmatpush1.bf16.msra.mxu0 %v123
    %147 = vmatprep.subr.bf16.mxu0 0
    %148 = vmatpush1.bf16.msra.mxu0 %v124
    %149 = vmatprep.subr.bf16.mxu0 0
    %150 = vmatpush1.bf16.msra.mxu0 0
    %151 = vmatprep.subr.bf16.mxu0 0
    %152 = vmatpush1.bf16.msra.mxu0 0
    %153 = vmatprep.subr.bf16.mxu0 0
    %154 = vmatpush1.bf16.msra.mxu0 0
    %155 = vmatprep.subr.bf16.mxu0 0
    %156 = vmatpush1.bf16.msra.mxu0 0
    %157 = vmatprep.subr.bf16.mxu0 0
    %158 = vmatpush1.bf16.msra.mxu0 0
    %159 = vmatprep.subr.bf16.mxu0 0
    %160 = vmatpush1.bf16.msra.mxu0 0
    %161 = vmatprep.subr.bf16.mxu0 0
    %162 = vmatpush1.bf16.msra.mxu0 0
    %163 = vmatprep.subr.bf16.mxu0 0
    %164 = vmatpush1.bf16.msra.mxu0 0
    %165 = vmatprep.mubr.bf16.mxu0 0
    %166 = vmatmul.mubr.bf16.gmra.mrb[0].mxu0 %v61
    %v167 = vpop.f32.mrb[0].mxu0
    %v168 = vadd.f32 %v83, %v167
    %v169 = vpop.f32.mrb[0].mxu0
    %v170 = vpop.f32.mrb[0].mxu0
    %v171 = vpop.f32.mrb[0].mxu0
    %172 = vdwg.mxu0
    %v173 = vmul.f32 %v168, 0.01
    %v174 = vmax.f32 %v168, %v173
    %v175 = vpack.c.bf16 %v174, %v174
    %v176 = vld [vmem:[#allocation7] sm:$0xf]
    %v177 = vld [vmem:[#allocation7 + $0x4] sm:$0xf]
    %v178 = vld [vmem:[#allocation7 + $0x8] sm:$0xf]
    %v179 = vld [vmem:[#allocation7 + $0xc] sm:$0xf]
    %v180 = vld [vmem:[#allocation7 + $0x10] sm:$0xf]
    %v181 = vld [vmem:[#allocation7 + $0x14] sm:$0xf]
    %v182 = vld [vmem:[#allocation7 + $0x18] sm:$0xf]
    %v183 = vld [vmem:[#allocation7 + $0x1c] sm:$0xf]
    %v184 = vld [vmem:[#allocation7 + $0x20] sm:$0xf]
    %v185 = vld [vmem:[#allocation7 + $0x24] sm:$0xf]
    %v186 = vld [vmem:[#allocation7 + $0x28] sm:$0xf]
    %v187 = vld [vmem:[#allocation7 + $0x2c] sm:$0xf]
    %v188 = vld [vmem:[#allocation7 + $0x30] sm:$0xf]
    %v189 = vld [vmem:[#allocation7 + $0x34] sm:$0xf]
    %v190 = vld [vmem:[#allocation7 + $0x38] sm:$0xf]
    %v191 = vld [vmem:[#allocation7 + $0x3c] sm:$0xf]
    %v192 = vld [vmem:[%s4] sm:$0x1]
    %v194 = vlaneseq
    %v195 = vshrl.u32 %v194, 7
    %v196 = vsub.s32 0, %v195
    %v197 = vrot.slane %v192, %v196
    %v215 = vunpack.c.l.b16 %v176
    %v216 = vunpack.c.l.b16 %v177
    %v217 = vunpack.c.l.b16 %v178
    %v218 = vunpack.c.l.b16 %v179
    %v219 = vunpack.c.l.b16 %v180
    %v220 = vunpack.c.l.b16 %v181
    %v221 = vunpack.c.l.b16 %v182
    %v222 = vunpack.c.l.b16 %v183
    %v223 = vunpack.c.l.b16 %v184
    %v224 = vunpack.c.l.b16 %v185
    %v225 = vunpack.c.l.b16 %v186
    %v226 = vunpack.c.l.b16 %v187
    %v227 = vunpack.c.l.b16 %v188
    %v228 = vunpack.c.l.b16 %v189
    %v229 = vunpack.c.l.b16 %v190
    %v230 = vunpack.c.l.b16 %v191
    %v231 = vpack.c.b16 %v216, %v215
    %v232 = vpack.c.b16 %v218, %v217
    %v233 = vpack.c.b16 %v220, %v219
    %v234 = vpack.c.b16 %v222, %v221
    %v235 = vpack.c.b16 %v224, %v223
    %v236 = vpack.c.b16 %v226, %v225
    %v237 = vpack.c.b16 %v228, %v227
    %v238 = vpack.c.b16 %v230, %v229
    %247 = vmatprep.subr.bf16.mxu0 0
    %248 = vmatpush1.bf16.msra.mxu0 %v231
    %249 = vmatprep.subr.bf16.mxu0 0
    %250 = vmatpush1.bf16.msra.mxu0 %v232
    %251 = vmatprep.subr.bf16.mxu0 0
    %252 = vmatpush1.bf16.msra.mxu0 %v233
    %253 = vmatprep.subr.bf16.mxu0 0
    %254 = vmatpush1.bf16.msra.mxu0 %v234
    %255 = vmatprep.subr.bf16.mxu0 0
    %256 = vmatpush1.bf16.msra.mxu0 %v235
    %257 = vmatprep.subr.bf16.mxu0 0
    %258 = vmatpush1.bf16.msra.mxu0 %v236
    %259 = vmatprep.subr.bf16.mxu0 0
    %260 = vmatpush1.bf16.msra.mxu0 %v237
    %261 = vmatprep.subr.bf16.mxu0 0
    %262 = vmatpush1.bf16.msra.mxu0 %v238
    %263 = vmatprep.subr.bf16.mxu0 0
    %264 = vmatpush1.bf16.msra.mxu0 0
    %265 = vmatprep.subr.bf16.mxu0 0
    %266 = vmatpush1.bf16.msra.mxu0 0
    %267 = vmatprep.subr.bf16.mxu0 0
    %268 = vmatpush1.bf16.msra.mxu0 0
    %269 = vmatprep.subr.bf16.mxu0 0
    %270 = vmatpush1.bf16.msra.mxu0 0
    %271 = vmatprep.subr.bf16.mxu0 0
    %272 = vmatpush1.bf16.msra.mxu0 0
    %273 = vmatprep.subr.bf16.mxu0 0
    %274 = vmatpush1.bf16.msra.mxu0 0
    %275 = vmatprep.subr.bf16.mxu0 0
    %276 = vmatpush1.bf16.msra.mxu0 0
    %277 = vmatprep.subr.bf16.mxu0 0
    %278 = vmatpush1.bf16.msra.mxu0 0
    %279 = vmatprep.mubr.bf16.mxu0 0
    %280 = vmatmul.mubr.bf16.gmra.mrb[0].mxu0 %v175
    %v281 = vpop.f32.mrb[0].mxu0
    %v282 = vadd.f32 %v197, %v281
    %v283 = vpop.f32.mrb[0].mxu0
    %v284 = vpop.f32.mrb[0].mxu0
    %v285 = vpop.f32.mrb[0].mxu0
    %286 = vdwg.mxu0
    %v287 = vmul.f32 %v282, 0.01
    %v288 = vmax.f32 %v282, %v287
    %289 = vst [vmem:[#allocation8] sm:$0xff] %v288
    // Predicated region
    $region34: #{tpu_custom_call.1} parent=1 // pred_check
      _
    $region35: #{tpu_custom_call.1} parent=1 // pred_check_branch
      %291 = sbr.rel (0) target = $region37
    $region36: #{tpu_custom_call.1} parent=1 // pred_region
      %s293 = ssub.s32 128, 128
      %294 = vsyncadd [#allocation4], %s293
      %s296 = sshll.u32 [#allocation8], 4
      %s297 = int_to_ptr.vmem [resolvable:$true] %s296
      %299 = dma.vmem_to_hbm [thread:$0]  %s297, 128, %s5, [#allocation4]
    $region37: #{tpu_custom_call.1} parent=1 // pred_fallthru
      _
    // Predicated region
    $region38: #{tpu_custom_call.1} parent=1 // pred_check
      _
    $region39: #{tpu_custom_call.1} parent=1 // pred_check_branch
      %301 = sbr.rel (0) target = $region41
    $region40: #{tpu_custom_call.1} parent=1 // pred_region
      %302 = dma.done [#allocation4], 128
    $region41: #{tpu_custom_call.1} parent=1 // pred_fallthru
      _
    %303 = vsyncpa [#allocation3], 1
    %304 = vsyncpa [#allocation6], 1
    %305 = vsyncpa [#allocation4], 1

</llo_original>
